<compile_context>
chip_gen: v6e
topology: v6e:2x2x1
jax: 0.10.0
libtpu: 0.0.40
codegen_flags: <defaults>
</compile_context>

<pallas_src>
import jax
import jax.numpy as jnp
from jax.experimental import pallas as pl
from jax.experimental.pallas import tpu as pltpu


def _round_up(x, m):
    return ((x + m - 1) // m) * m


def critic_kernel(s_ref, a_ref, w1s_ref, w1a_ref, b1_ref, w2_ref, b2_ref,
                  w3_ref, b3_ref, o_ref):
    # Layer 1: concat folded into two MXU dots (W1 split row-wise), f32 accumulate.
    h1 = jnp.dot(s_ref[...], w1s_ref[...], preferred_element_type=jnp.float32)
    h1 = h1 + jnp.dot(a_ref[...], w1a_ref[...], preferred_element_type=jnp.float32)
    h1 = jnp.maximum(h1 + b1_ref[...], 0.0)                       # f32 bias + ReLU (VPU)

    # Layer 2: bf16 (or f32) MXU operands, f32 accumulate, f32 elementwise.
    h2 = jnp.dot(h1.astype(w2_ref.dtype), w2_ref[...],
                 preferred_element_type=jnp.float32)
    h2 = jnp.maximum(h2 + b2_ref[...], 0.0)

    # Layer 3 (H -> 1): VPU multiply + XLU transpose/reduce instead of a 1-output-lane MXU matmul;
    # the result is written as a lane-dense (1, tile_b) row.
    prod = h2 * w3_ref[...]                                        # (tile_b, H) * (1, H)
    out_row = jnp.sum(prod.T, axis=0, keepdims=True) + b3_ref[0]   # (1, tile_b)
    o_ref[...] = out_row.astype(o_ref.dtype)


def critic_forward(state, action, params, *, compute_dtype=jnp.bfloat16, batch_tile=256):
    """Equivalent of Critic.forward: cat([state, action], dim=1) -> 3-layer MLP -> (B, 1)."""
    w1, b1, w2, b2, w3, b3 = params
    B, S = state.shape
    _, A = action.shape
    H = w1.shape[1]

    # Batch tiling: tile rows (multiple of 8), pad batch to a tile multiple.
    tb = min(batch_tile, _round_up(B, 8))
    b_pad = _round_up(B, tb)
    # Hidden dim padded to a lane multiple (zero padding is numerically inert through ReLU).
    h_pad = _round_up(H, 128)
    dh = h_pad - H

    pad_rows = lambda x: jnp.pad(x, ((0, b_pad - B), (0, 0)))
    s = pad_rows(state).astype(compute_dtype)
    a = pad_rows(action).astype(compute_dtype)

    w1s = jnp.pad(w1[:S], ((0, 0), (0, dh))).astype(compute_dtype)
    w1a = jnp.pad(w1[S:], ((0, 0), (0, dh))).astype(compute_dtype)
    b1p = jnp.pad(b1, ((0, 0), (0, dh))).astype(jnp.float32)
    w2p = jnp.pad(w2, ((0, dh), (0, dh))).astype(compute_dtype)
    b2p = jnp.pad(b2, ((0, 0), (0, dh))).astype(jnp.float32)
    w3r = jnp.pad(w3.reshape(1, H), ((0, 0), (0, dh))).astype(jnp.float32)
    b3s = b3.reshape(-1).astype(jnp.float32)                       # (1,) scalar -> SMEM

    grid = (b_pad // tb,)
    resident = lambda shape: pl.BlockSpec(shape, lambda i: (0, 0))

    out = pl.pallas_call(
        critic_kernel,
        out_shape=jax.ShapeDtypeStruct((1, b_pad), jnp.float32),
        grid=grid,
        in_specs=[
            pl.BlockSpec((tb, S), lambda i: (i, 0)),               # state tile (streamed)
            pl.BlockSpec((tb, A), lambda i: (i, 0)),               # action tile (streamed)
            resident((S, h_pad)),                                  # W1[:S]   (resident)
            resident((A, h_pad)),                                  # W1[S:]   (resident)
            resident((1, h_pad)),                                  # b1
            resident((h_pad, h_pad)),                              # W2
            resident((1, h_pad)),                                  # b2
            resident((1, h_pad)),                                  # W3 as a row
            pl.BlockSpec(memory_space=pltpu.MemorySpace.SMEM),     # b3 scalar
        ],
        out_specs=pl.BlockSpec((1, tb), lambda i: (0, i)),         # lane-dense output row
        compiler_params=pltpu.CompilerParams(
            dimension_semantics=("parallel",)),
    )(s, a, w1s, w1a, b1p, w2p, b2p, w3r, b3s)

    return out[0, :B].reshape(B, 1)


def init_critic_params(key, state_dim, action_dim, hidden_size):
    """Deterministic init matching nn.Linear shapes (weights stored transposed: [in, out])."""
    d_in = state_dim + action_dim
    ks = jax.random.split(key, 6)

    def linear(kw, kb, fan_in, fan_out):
        bound = 1.0 / jnp.sqrt(jnp.float32(fan_in))
        w = jax.random.uniform(kw, (fan_in, fan_out), jnp.float32, -bound, bound)
        b = jax.random.uniform(kb, (1, fan_out), jnp.float32, -bound, bound)
        return w, b

    w1, b1 = linear(ks[0], ks[1], d_in, hidden_size)
    w2, b2 = linear(ks[2], ks[3], hidden_size, hidden_size)
    w3, b3 = linear(ks[4], ks[5], hidden_size, 1)
    return (w1, b1, w2, b2, w3, b3)


def critic_reference(state, action, params):
    w1, b1, w2, b2, w3, b3 = params
    x = jnp.concatenate([state, action], axis=1)
    h1 = jnp.maximum(x @ w1 + b1, 0.0)
    h2 = jnp.maximum(h1 @ w2 + b2, 0.0)
    return h2 @ w3 + b3


if __name__ == "__main__":
    key = jax.random.PRNGKey(0)

    # --- Small shapes matching the module / test harness ---
    batch, state_dim, action_dim, hidden_size = 2, 8, 4, 32
    k_state, k_action, k_params = jax.random.split(key, 3)
    state = jax.random.normal(k_state, (batch, state_dim), jnp.float32)
    action = jax.random.normal(k_action, (batch, action_dim), jnp.float32)
    params = init_critic_params(k_params, state_dim, action_dim, hidden_size)

    ref = critic_reference(state, action, params)

    # Exact-math path (f32 MXU operands) must match the reference tightly.
    out_f32 = jax.block_until_ready(
        critic_forward(state, action, params, compute_dtype=jnp.float32))
    assert out_f32.shape == (batch, 1), out_f32.shape
    assert jnp.allclose(out_f32, ref, atol=1e-5, rtol=1e-5), (out_f32, ref)

    # Default fast path: bf16 MXU operands, f32 accumulation (looser tolerance).
    out_bf16 = jax.block_until_ready(critic_forward(state, action, params))
    assert out_bf16.shape == (batch, 1), out_bf16.shape
    assert jnp.allclose(out_bf16, ref, atol=5e-2, rtol=5e-2), (out_bf16, ref)

    # --- Multi-tile grid smoke test (module default hidden=128, batch > one tile) ---
    kb2 = jax.random.split(key, 2)
    state2 = jax.random.normal(kb2[0], (300, 17), jnp.float32)
    action2 = jax.random.normal(kb2[1], (300, 6), jnp.float32)
    params2 = init_critic_params(jax.random.PRNGKey(1), 17, 6, 128)
    out2 = jax.block_until_ready(critic_forward(state2, action2, params2))
    ref2 = critic_reference(state2, action2, params2)
    assert out2.shape == (300, 1), out2.shape
    assert jnp.allclose(out2, ref2, atol=5e-2, rtol=5e-2)

    print("KERNEL_OK")
</pallas_src>

<mosaic_0001>
module attributes {stable_mosaic.version = 11 : i64} {
  func.func @critic_kernel(%arg0: i32, %arg1: memref<8x8xf32, #tpu.memory_space<vmem>>, %arg2: memref<8x4xf32, #tpu.memory_space<vmem>>, %arg3: memref<8x128xf32, #tpu.memory_space<vmem>>, %arg4: memref<4x128xf32, #tpu.memory_space<vmem>>, %arg5: memref<1x128xf32, #tpu.memory_space<vmem>>, %arg6: memref<128x128xf32, #tpu.memory_space<vmem>>, %arg7: memref<1x128xf32, #tpu.memory_space<vmem>>, %arg8: memref<1x128xf32, #tpu.memory_space<vmem>>, %arg9: memref<1xf32, #tpu.memory_space<smem>>, %arg10: memref<1x8xf32, #tpu.memory_space<vmem>>) attributes {dimension_semantics = [#tpu.dimension_semantics<parallel>], iteration_bounds = array<i64: 1>, scalar_prefetch = 0 : i64, scratch_operands = 0 : i64, tpu.core_type = #tpu.core_type<tc>, window_params = [{transform_indices = @transform_0, window_bounds = array<i64: 8, 8>}, {transform_indices = @transform_1, window_bounds = array<i64: 8, 4>}, {pipeline_mode = #tpu.pipeline_mode<synchronous>, transform_indices = @transform_2, window_bounds = array<i64: 8, 128>}, {pipeline_mode = #tpu.pipeline_mode<synchronous>, transform_indices = @transform_3, window_bounds = array<i64: 4, 128>}, {pipeline_mode = #tpu.pipeline_mode<synchronous>, transform_indices = @transform_4, window_bounds = array<i64: 1, 128>}, {pipeline_mode = #tpu.pipeline_mode<synchronous>, transform_indices = @transform_5, window_bounds = array<i64: 128, 128>}, {pipeline_mode = #tpu.pipeline_mode<synchronous>, transform_indices = @transform_6, window_bounds = array<i64: 1, 128>}, {pipeline_mode = #tpu.pipeline_mode<synchronous>, transform_indices = @transform_7, window_bounds = array<i64: 1, 128>}, {transform_indices = @transform_8, window_bounds = array<i64: 1>}, {transform_indices = @transform_9, window_bounds = array<i64: 1, 8>}]} {
    %c0 = arith.constant 0 : index
    %c0_0 = arith.constant 0 : index
    %0 = vector.load %arg1[%c0, %c0_0] : memref<8x8xf32, #tpu.memory_space<vmem>>, vector<8x8xf32>
    %c0_1 = arith.constant 0 : index
    %c0_2 = arith.constant 0 : index
    %1 = vector.load %arg3[%c0_1, %c0_2] : memref<8x128xf32, #tpu.memory_space<vmem>>, vector<8x128xf32>
    %cst = arith.constant dense<0.000000e+00> : vector<8x128xf32>
    %2 = tpu.matmul %0, %1, %cst {dimension_numbers = #tpu.dot_dimension_numbers<[1], [0], [0], [1], [0, 0, 1, 1], [], []>} : vector<8x8xf32>, vector<8x128xf32>, vector<8x128xf32> -> vector<8x128xf32>
    %c0_3 = arith.constant 0 : index
    %c0_4 = arith.constant 0 : index
    %3 = vector.load %arg2[%c0_3, %c0_4] : memref<8x4xf32, #tpu.memory_space<vmem>>, vector<8x4xf32>
    %c0_5 = arith.constant 0 : index
    %c0_6 = arith.constant 0 : index
    %4 = vector.load %arg4[%c0_5, %c0_6] : memref<4x128xf32, #tpu.memory_space<vmem>>, vector<4x128xf32>
    %cst_7 = arith.constant dense<0.000000e+00> : vector<8x128xf32>
    %5 = tpu.matmul %3, %4, %cst_7 {dimension_numbers = #tpu.dot_dimension_numbers<[1], [0], [0], [1], [0, 0, 1, 1], [], []>} : vector<8x4xf32>, vector<4x128xf32>, vector<8x128xf32> -> vector<8x128xf32>
    %6 = arith.addf %2, %5 : vector<8x128xf32>
    %c0_8 = arith.constant 0 : index
    %c0_9 = arith.constant 0 : index
    %7 = vector.load %arg5[%c0_8, %c0_9] : memref<1x128xf32, #tpu.memory_space<vmem>>, vector<1x128xf32>
    %8 = vector.broadcast %7 : vector<1x128xf32> to vector<8x128xf32>
    %9 = arith.addf %6, %8 : vector<8x128xf32>
    %cst_10 = arith.constant 0.000000e+00 : f32
    %10 = vector.broadcast %cst_10 : f32 to vector<8x128xf32>
    %11 = arith.maximumf %9, %10 : vector<8x128xf32>
    %c0_11 = arith.constant 0 : index
    %c0_12 = arith.constant 0 : index
    %12 = vector.load %arg6[%c0_11, %c0_12] : memref<128x128xf32, #tpu.memory_space<vmem>>, vector<128x128xf32>
    %cst_13 = arith.constant dense<0.000000e+00> : vector<8x128xf32>
    %13 = tpu.matmul %11, %12, %cst_13 {dimension_numbers = #tpu.dot_dimension_numbers<[1], [0], [0], [1], [0, 0, 1, 1], [], []>} : vector<8x128xf32>, vector<128x128xf32>, vector<8x128xf32> -> vector<8x128xf32>
    %c0_14 = arith.constant 0 : index
    %c0_15 = arith.constant 0 : index
    %14 = vector.load %arg7[%c0_14, %c0_15] : memref<1x128xf32, #tpu.memory_space<vmem>>, vector<1x128xf32>
    %15 = vector.broadcast %14 : vector<1x128xf32> to vector<8x128xf32>
    %16 = arith.addf %13, %15 : vector<8x128xf32>
    %cst_16 = arith.constant 0.000000e+00 : f32
    %17 = vector.broadcast %cst_16 : f32 to vector<8x128xf32>
    %18 = arith.maximumf %16, %17 : vector<8x128xf32>
    %c0_17 = arith.constant 0 : index
    %c0_18 = arith.constant 0 : index
    %19 = vector.load %arg8[%c0_17, %c0_18] : memref<1x128xf32, #tpu.memory_space<vmem>>, vector<1x128xf32>
    %20 = vector.broadcast %19 : vector<1x128xf32> to vector<8x128xf32>
    %21 = arith.mulf %18, %20 : vector<8x128xf32>
    %22 = tpu.transpose %21, [1, 0] : vector<8x128xf32> -> vector<128x8xf32>
    %cst_19 = arith.constant dense<0.000000e+00> : vector<8xf32>
    %23 = vector.multi_reduction <add>, %22, %cst_19 [0] : vector<128x8xf32> to vector<8xf32>
    %24 = vector.shape_cast %23 : vector<8xf32> to vector<1x8xf32>
    %c0_20 = arith.constant 0 : index
    %25 = memref.load %arg9[%c0_20] : memref<1xf32, #tpu.memory_space<smem>>
    %26 = vector.broadcast %25 : f32 to vector<1x8xf32>
    %27 = arith.addf %24, %26 : vector<1x8xf32>
    %c0_21 = arith.constant 0 : index
    %c0_22 = arith.constant 0 : index
    %28 = vector.load %arg10[%c0_21, %c0_22] : memref<1x8xf32, #tpu.memory_space<vmem>>, vector<1x8xf32>
    tpu.vector_store %arg10[%c0_21, %c0_22], %27 {strides = array<i32>} : memref<1x8xf32, #tpu.memory_space<vmem>>, vector<1x8xf32>,
    return
  }
  func.func @transform_0(%arg0: i32) -> (i32, i32) {
    %c0_i32 = arith.constant 0 : i32
    %c0_i32_0 = arith.constant 0 : i32
    return %arg0, %c0_i32 : i32, i32
  }
  func.func @transform_1(%arg0: i32) -> (i32, i32) {
    %c0_i32 = arith.constant 0 : i32
    %c0_i32_0 = arith.constant 0 : i32
    return %arg0, %c0_i32 : i32, i32
  }
  func.func @transform_2(%arg0: i32) -> (i32, i32) {
    %c0_i32 = arith.constant 0 : i32
    %c0_i32_0 = arith.constant 0 : i32
    %c0_i32_1 = arith.constant 0 : i32
    return %c0_i32, %c0_i32_0 : i32, i32
  }
  func.func @transform_3(%arg0: i32) -> (i32, i32) {
    %c0_i32 = arith.constant 0 : i32
    %c0_i32_0 = arith.constant 0 : i32
    %c0_i32_1 = arith.constant 0 : i32
    return %c0_i32, %c0_i32_0 : i32, i32
  }
  func.func @transform_4(%arg0: i32) -> (i32, i32) {
    %c0_i32 = arith.constant 0 : i32
    %c0_i32_0 = arith.constant 0 : i32
    %c0_i32_1 = arith.constant 0 : i32
    return %c0_i32, %c0_i32_0 : i32, i32
  }
  func.func @transform_5(%arg0: i32) -> (i32, i32) {
    %c0_i32 = arith.constant 0 : i32
    %c0_i32_0 = arith.constant 0 : i32
    %c0_i32_1 = arith.constant 0 : i32
    return %c0_i32, %c0_i32_0 : i32, i32
  }
  func.func @transform_6(%arg0: i32) -> (i32, i32) {
    %c0_i32 = arith.constant 0 : i32
    %c0_i32_0 = arith.constant 0 : i32
    %c0_i32_1 = arith.constant 0 : i32
    return %c0_i32, %c0_i32_0 : i32, i32
  }
  func.func @transform_7(%arg0: i32) -> (i32, i32) {
    %c0_i32 = arith.constant 0 : i32
    %c0_i32_0 = arith.constant 0 : i32
    %c0_i32_1 = arith.constant 0 : i32
    return %c0_i32, %c0_i32_0 : i32, i32
  }
  func.func @transform_8(%arg0: i32) -> i32 {
    %c0_i32 = arith.constant 0 : i32
    %c0_i32_0 = arith.constant 0 : i32
    return %c0_i32 : i32
  }
  func.func @transform_9(%arg0: i32) -> (i32, i32) {
    %c0_i32 = arith.constant 0 : i32
    %c0_i32_0 = arith.constant 0 : i32
    return %c0_i32, %arg0 : i32, i32
  }
}

</mosaic_0001>

<llo_original>
// kernel: tpu_custom_call.1
$region0: #{tpu_custom_call.1}
  #allocation0 [shape = 'u32[]', space=smem, size = 0x4, offset = 0x4, fixed_abs, tag = 'smem constant byte address 0x4 - core index']
  #allocation1 [shape = 'u32[144,128]{1,0:T(1,128)}', space=vmem, size = 0x12000, scoped, tag = 'internal scratch']
  #allocation2 [shape = 'f32[1]{0:T(128)S(6)}', space=smem, size = 0x200, scoped, tag = 'scoped memory for tpu_custom_call.1']
  %s0 = inlined_call_operand.vmem [shape: f32[8,8], index: 0, kind: input, shape index: {}]
  %s1 = inlined_call_operand.vmem [shape: f32[8,4], index: 1, kind: input, shape index: {}]
  %s2 = inlined_call_operand.vmem [shape: f32[8,128], index: 2, kind: input, shape index: {}]
  %s3 = inlined_call_operand.hbm [shape: f32[4,128], index: 3, kind: input, shape index: {}]
  %s4 = inlined_call_operand.vmem [shape: f32[1,128], index: 4, kind: input, shape index: {}]
  %s5 = inlined_call_operand.hbm [shape: f32[128,128], index: 5, kind: input, shape index: {}]
  %s6 = inlined_call_operand.vmem [shape: f32[1,128], index: 6, kind: input, shape index: {}]
  %s7 = inlined_call_operand.vmem [shape: f32[1,128], index: 7, kind: input, shape index: {}]
  %s8 = inlined_call_operand.<no memory space> [shape: f32[1], index: 8, kind: input, shape index: {}]
  %s9 = inlined_call_operand.hbm [shape: f32[1,8], index: 9, kind: output, shape index: {}]
  %s10 = sld [smem:[#allocation0]]
  $region54: #{tpu_custom_call.1} parent=0
    _
  %s12 = ssub.s32 1, %s10
  %s13 = scalar_select 0, %s12, %s10
  %14 = sst [smem:[#allocation2]] %s8
  $region1: #{tpu_custom_call.1} parent=0
    #allocation3 [shape = 'u8[2048]{0}', space=vmem, size = 0x800, scoped, tag = 'input window, operand 3, single buffered']
    #allocation4 [shape = 's32[1]{0}', space=sflag, size = 0x4, scoped, tag = 'scoped memory for tpu_custom_call.1']
    #allocation5 [shape = 's32[1]{0}', space=sflag, size = 0x4, scoped, tag = 'scoped memory for tpu_custom_call.1']
    #allocation6 [shape = 'u8[65536]{0}', space=vmem, size = 0x10000, scoped, tag = 'input window, operand 5, single buffered']
    #allocation7 [shape = 's32[1]{0}', space=sflag, size = 0x4, scoped, tag = 'scoped memory for tpu_custom_call.1']
    #allocation8 [shape = 'u8[512]{0}', space=vmem, size = 0x400, scoped, tag = 'output window, operand 0, single buffered']
    %15 = vsyncpa [#allocation4], 0
    %16 = vsyncpa [#allocation7], 0
    %17 = vsyncpa [#allocation5], 0
    // Predicated region
    $region2: #{tpu_custom_call.1} parent=1 // pred_check
      _
    $region3: #{tpu_custom_call.1} parent=1 // pred_check_branch
      %19 = sbr.rel (0) target = $region5
    $region4: #{tpu_custom_call.1} parent=1 // pred_region
      _
    $region5: #{tpu_custom_call.1} parent=1 // pred_fallthru
      _
    // Predicated region
    $region6: #{tpu_custom_call.1} parent=1 // pred_check
      _
    $region7: #{tpu_custom_call.1} parent=1 // pred_check_branch
      %21 = sbr.rel (0) target = $region9
    $region8: #{tpu_custom_call.1} parent=1 // pred_region
      _
    $region9: #{tpu_custom_call.1} parent=1 // pred_fallthru
      _
    // Predicated region
    $region10: #{tpu_custom_call.1} parent=1 // pred_check
      _
    $region11: #{tpu_custom_call.1} parent=1 // pred_check_branch
      %23 = sbr.rel (0) target = $region13
    $region12: #{tpu_custom_call.1} parent=1 // pred_region
      _
    $region13: #{tpu_custom_call.1} parent=1 // pred_fallthru
      _
    // Predicated region
    $region14: #{tpu_custom_call.1} parent=1 // pred_check
      _
    $region15: #{tpu_custom_call.1} parent=1 // pred_check_branch
      %25 = sbr.rel (0) target = $region17
    $region16: #{tpu_custom_call.1} parent=1 // pred_region
      %s27 = ssub.s32 64, 64
      %28 = vsyncadd [#allocation4], %s27
      %s30 = sshll.u32 [#allocation3], 4
      %s31 = int_to_ptr.vmem [resolvable:$true] %s30
      %33 = dma.hbm_to_vmem [thread:$0]  %s3, 64, %s31, [#allocation4]
    $region17: #{tpu_custom_call.1} parent=1 // pred_fallthru
      _
    // Predicated region
    $region18: #{tpu_custom_call.1} parent=1 // pred_check
      _
    $region19: #{tpu_custom_call.1} parent=1 // pred_check_branch
      %35 = sbr.rel (0) target = $region21
    $region20: #{tpu_custom_call.1} parent=1 // pred_region
      _
    $region21: #{tpu_custom_call.1} parent=1 // pred_fallthru
      _
    // Predicated region
    $region22: #{tpu_custom_call.1} parent=1 // pred_check
      _
    $region23: #{tpu_custom_call.1} parent=1 // pred_check_branch
      %37 = sbr.rel (0) target = $region25
    $region24: #{tpu_custom_call.1} parent=1 // pred_region
      %s39 = ssub.s32 2048, 2048
      %40 = vsyncadd [#allocation7], %s39
      %s41 = sshll.u32 [#allocation6], 4
      %s42 = int_to_ptr.vmem [resolvable:$true] %s41
      %47 = dma.hbm_to_vmem [thread:$0]  %s5, 2048, %s42, [#allocation7], 128, 128, 8
    $region25: #{tpu_custom_call.1} parent=1 // pred_fallthru
      _
    // Predicated region
    $region26: #{tpu_custom_call.1} parent=1 // pred_check
      _
    $region27: #{tpu_custom_call.1} parent=1 // pred_check_branch
      %49 = sbr.rel (0) target = $region29
    $region28: #{tpu_custom_call.1} parent=1 // pred_region
      _
    $region29: #{tpu_custom_call.1} parent=1 // pred_fallthru
      _
    // Predicated region
    $region30: #{tpu_custom_call.1} parent=1 // pred_check
      _
    $region31: #{tpu_custom_call.1} parent=1 // pred_check_branch
      %51 = sbr.rel (0) target = $region33
    $region32: #{tpu_custom_call.1} parent=1 // pred_region
      _
    $region33: #{tpu_custom_call.1} parent=1 // pred_fallthru
      _
    // Predicated region
    $region34: #{tpu_custom_call.1} parent=1 // pred_check
      _
    $region35: #{tpu_custom_call.1} parent=1 // pred_check_branch
      %53 = sbr.rel (0) target = $region37
    $region36: #{tpu_custom_call.1} parent=1 // pred_region
      _
    $region37: #{tpu_custom_call.1} parent=1 // pred_fallthru
      _
    // Predicated region
    $region38: #{tpu_custom_call.1} parent=1 // pred_check
      _
    $region39: #{tpu_custom_call.1} parent=1 // pred_check_branch
      %55 = sbr.rel (0) target = $region41
    $region40: #{tpu_custom_call.1} parent=1 // pred_region
      %56 = dma.done [#allocation4], 64
    $region41: #{tpu_custom_call.1} parent=1 // pred_fallthru
      _
    // Predicated region
    $region42: #{tpu_custom_call.1} parent=1 // pred_check
      _
    $region43: #{tpu_custom_call.1} parent=1 // pred_check_branch
      %58 = sbr.rel (0) target = $region45
    $region44: #{tpu_custom_call.1} parent=1 // pred_region
      %59 = dma.done [#allocation7], 2048
    $region45: #{tpu_custom_call.1} parent=1 // pred_fallthru
      _
    %v60 = vld [vmem:[%s0] sm:$0xff]
    %v61 = vld [vmem:[%s2] sm:$0xff]
    %v62 = vld [vmem:[%s1] sm:$0xff]
    %v63 = vld [vmem:[#allocation3] sm:$0xf]
    %vm64 = vcmask 31744
    %v66 = vsel %vm64, %v62, 0
    %vm68 = vcmask 1043456
    %v70 = vsel %vm68, %v63, 0
    %72 = vmatprep.subr.mxu0 0.0
    %73 = vmatpush1.msra.mxu0 0.0
    %74 = vmatprep.subr.mxu0 0.0
    %75 = vmatpush1.msra.mxu0 0.0
    %76 = vmatprep.subr.mxu0 0.0
    %77 = vmatpush1.msra.mxu0 0.0
    %78 = vmatprep.subr.mxu0 0.0
    %79 = vmatpush1.msra.mxu0 0.0
    %80 = vmatprep.subr.mxu0 0.0
    %81 = vmatpush1.msra.mxu0 0.0
    %82 = vmatprep.subr.mxu0 0.0
    %83 = vmatpush1.msra.mxu0 0.0
    %84 = vmatprep.subr.mxu0 0.0
    %85 = vmatpush1.msra.mxu0 0.0
    %86 = vmatprep.subr.mxu0 0.0
    %87 = vmatpush1.msra.mxu0 0.0
    %88 = vmatprep.subr.mxu0 0.0
    %89 = vmatpush1.msra.mxu0 0.0
    %90 = vmatprep.subr.mxu0 0.0
    %91 = vmatpush1.msra.mxu0 0.0
    %92 = vmatprep.subr.mxu0 0.0
    %93 = vmatpush1.msra.mxu0 0.0
    %94 = vmatprep.subr.mxu0 0.0
    %95 = vmatpush1.msra.mxu0 0.0
    %96 = vmatprep.subr.mxu0 0.0
    %97 = vmatpush1.msra.mxu0 0.0
    %98 = vmatprep.subr.mxu0 0.0
    %99 = vmatpush1.msra.mxu0 0.0
    %100 = vmatprep.subr.mxu0 0.0
    %101 = vmatpush1.msra.mxu0 0.0
    %102 = vmatprep.subr.mxu0 0.0
    %103 = vmatpush1.msra.mxu0 %v70
    %104 = vmatprep.subr.mxu0 0.0
    %105 = vmatpush2.msra.mxu0 0.0
    %106 = vmatprep.subr.mxu0 0.0
    %107 = vmatpush2.msra.mxu0 0.0
    %108 = vmatprep.subr.mxu0 0.0
    %109 = vmatpush2.msra.mxu0 0.0
    %110 = vmatprep.subr.mxu0 0.0
    %111 = vmatpush2.msra.mxu0 0.0
    %112 = vmatprep.subr.mxu0 0.0
    %113 = vmatpush2.msra.mxu0 0.0
    %114 = vmatprep.subr.mxu0 0.0
    %115 = vmatpush2.msra.mxu0 0.0
    %116 = vmatprep.subr.mxu0 0.0
    %117 = vmatpush2.msra.mxu0 0.0
    %118 = vmatprep.subr.mxu0 0.0
    %119 = vmatpush2.msra.mxu0 0.0
    %120 = vmatprep.subr.mxu0 0.0
    %121 = vmatpush2.msra.mxu0 0.0
    %122 = vmatprep.subr.mxu0 0.0
    %123 = vmatpush2.msra.mxu0 0.0
    %124 = vmatprep.subr.mxu0 0.0
    %125 = vmatpush2.msra.mxu0 0.0
    %126 = vmatprep.subr.mxu0 0.0
    %127 = vmatpush2.msra.mxu0 0.0
    %128 = vmatprep.subr.mxu0 0.0
    %129 = vmatpush2.msra.mxu0 0.0
    %130 = vmatprep.subr.mxu0 0.0
    %131 = vmatpush2.msra.mxu0 0.0
    %132 = vmatprep.subr.mxu0 0.0
    %133 = vmatpush2.msra.mxu0 0.0
    %134 = vmatprep.subr.mxu0 0.0
    %135 = vmatpush2.msra.mxu0 0.0
    %136 = vmatprep.mubr.f32.mxu0 0.0
    %137 = vmatmul.mubr.f32.gmra.mxu0 %v66
    %v138 = vpop.f32.mrf.mxu0
    %v139 = vadd.f32 0.0, %v138
    %v140 = vpop.f32.mrf.mxu0
    %141 = vdwg.mxu0
    %vm142 = vcmask 64512
    %v144 = vsel %vm142, %v60, 0
    %146 = vmatprep.subr.mxu0 0.0
    %147 = vmatpush1.msra.mxu0 0.0
    %148 = vmatprep.subr.mxu0 0.0
    %149 = vmatpush1.msra.mxu0 0.0
    %150 = vmatprep.subr.mxu0 0.0
    %151 = vmatpush1.msra.mxu0 0.0
    %152 = vmatprep.subr.mxu0 0.0
    %153 = vmatpush1.msra.mxu0 0.0
    %154 = vmatprep.subr.mxu0 0.0
    %155 = vmatpush1.msra.mxu0 0.0
    %156 = vmatprep.subr.mxu0 0.0
    %157 = vmatpush1.msra.mxu0 0.0
    %158 = vmatprep.subr.mxu0 0.0
    %159 = vmatpush1.msra.mxu0 0.0
    %160 = vmatprep.subr.mxu0 0.0
    %161 = vmatpush1.msra.mxu0 0.0
    %162 = vmatprep.subr.mxu0 0.0
    %163 = vmatpush1.msra.mxu0 0.0
    %164 = vmatprep.subr.mxu0 0.0
    %165 = vmatpush1.msra.mxu0 0.0
    %166 = vmatprep.subr.mxu0 0.0
    %167 = vmatpush1.msra.mxu0 0.0
    %168 = vmatprep.subr.mxu0 0.0
    %169 = vmatpush1.msra.mxu0 0.0
    %170 = vmatprep.subr.mxu0 0.0
    %171 = vmatpush1.msra.mxu0 0.0
    %172 = vmatprep.subr.mxu0 0.0
    %173 = vmatpush1.msra.mxu0 0.0
    %174 = vmatprep.subr.mxu0 0.0
    %175 = vmatpush1.msra.mxu0 0.0
    %176 = vmatprep.subr.mxu0 0.0
    %177 = vmatpush1.msra.mxu0 %v61
    %178 = vmatprep.subr.mxu0 0.0
    %179 = vmatpush2.msra.mxu0 0.0
    %180 = vmatprep.subr.mxu0 0.0
    %181 = vmatpush2.msra.mxu0 0.0
    %182 = vmatprep.subr.mxu0 0.0
    %183 = vmatpush2.msra.mxu0 0.0
    %184 = vmatprep.subr.mxu0 0.0
    %185 = vmatpush2.msra.mxu0 0.0
    %186 = vmatprep.subr.mxu0 0.0
    %187 = vmatpush2.msra.mxu0 0.0
    %188 = vmatprep.subr.mxu0 0.0
    %189 = vmatpush2.msra.mxu0 0.0
    %190 = vmatprep.subr.mxu0 0.0
    %191 = vmatpush2.msra.mxu0 0.0
    %192 = vmatprep.subr.mxu0 0.0
    %193 = vmatpush2.msra.mxu0 0.0
    %194 = vmatprep.subr.mxu0 0.0
    %195 = vmatpush2.msra.mxu0 0.0
    %196 = vmatprep.subr.mxu0 0.0
    %197 = vmatpush2.msra.mxu0 0.0
    %198 = vmatprep.subr.mxu0 0.0
    %199 = vmatpush2.msra.mxu0 0.0
    %200 = vmatprep.subr.mxu0 0.0
    %201 = vmatpush2.msra.mxu0 0.0
    %202 = vmatprep.subr.mxu0 0.0
    %203 = vmatpush2.msra.mxu0 0.0
    %204 = vmatprep.subr.mxu0 0.0
    %205 = vmatpush2.msra.mxu0 0.0
    %206 = vmatprep.subr.mxu0 0.0
    %207 = vmatpush2.msra.mxu0 0.0
    %208 = vmatprep.subr.mxu0 0.0
    %209 = vmatpush2.msra.mxu0 0.0
    %210 = vmatprep.mubr.f32.mxu0 0.0
    %211 = vmatmul.mubr.f32.gmra.mxu0 %v144
    %v212 = vpop.f32.mrf.mxu0
    %v213 = vadd.f32 %v139, %v212
    %v214 = vpop.f32.mrf.mxu0
    %215 = vdwg.mxu0
    %v216 = vld [vmem:[%s4] sm:$0x1]
    %v218 = vlaneseq
    %v219 = vshrl.u32 %v218, 7
    %v220 = vsub.s32 0, %v219
    %v221 = vrot.slane %v216, %v220
    %v223 = vadd.f32 %v213, %v221
    %v224 = vmax.f32 %v223, 0.0
    %v225 = vld [vmem:[#allocation6] sm:$0xff]
    %v226 = vld [vmem:[#allocation6 + $0x8] sm:$0xff]
    %v227 = vld [vmem:[#allocation6 + $0x10] sm:$0xff]
    %v228 = vld [vmem:[#allocation6 + $0x18] sm:$0xff]
    %v229 = vld [vmem:[#allocation6 + $0x20] sm:$0xff]
    %v230 = vld [vmem:[#allocation6 + $0x28] sm:$0xff]
    %v231 = vld [vmem:[#allocation6 + $0x30] sm:$0xff]
    %v232 = vld [vmem:[#allocation6 + $0x38] sm:$0xff]
    %v233 = vld [vmem:[#allocation6 + $0x40] sm:$0xff]
    %v234 = vld [vmem:[#allocation6 + $0x48] sm:$0xff]
    %v235 = vld [vmem:[#allocation6 + $0x50] sm:$0xff]
    %v236 = vld [vmem:[#allocation6 + $0x58] sm:$0xff]
    %v237 = vld [vmem:[#allocation6 + $0x60] sm:$0xff]
    %v238 = vld [vmem:[#allocation6 + $0x68] sm:$0xff]
    %v239 = vld [vmem:[#allocation6 + $0x70] sm:$0xff]
    %v240 = vld [vmem:[#allocation6 + $0x78] sm:$0xff]
    %v241 = vld [vmem:[%s6] sm:$0x1]
    %v243 = vlaneseq
    %v244 = vshrl.u32 %v243, 7
    %v245 = vsub.s32 0, %v244
    %v246 = vrot.slane %v241, %v245
    %248 = vmatprep.subr.mxu0 0.0
    %249 = vmatpush1.msra.mxu0 %v240
    %250 = vmatprep.subr.mxu0 0.0
    %251 = vmatpush1.msra.mxu0 %v239
    %252 = vmatprep.subr.mxu0 0.0
    %253 = vmatpush1.msra.mxu0 %v238
    %254 = vmatprep.subr.mxu0 0.0
    %255 = vmatpush1.msra.mxu0 %v237
    %256 = vmatprep.subr.mxu0 0.0
    %257 = vmatpush1.msra.mxu0 %v236
    %258 = vmatprep.subr.mxu0 0.0
    %259 = vmatpush1.msra.mxu0 %v235
    %260 = vmatprep.subr.mxu0 0.0
    %261 = vmatpush1.msra.mxu0 %v234
    %262 = vmatprep.subr.mxu0 0.0
    %263 = vmatpush1.msra.mxu0 %v233
    %264 = vmatprep.subr.mxu0 0.0
    %265 = vmatpush1.msra.mxu0 %v232
    %266 = vmatprep.subr.mxu0 0.0
    %267 = vmatpush1.msra.mxu0 %v231
    %268 = vmatprep.subr.mxu0 0.0
    %269 = vmatpush1.msra.mxu0 %v230
    %270 = vmatprep.subr.mxu0 0.0
    %271 = vmatpush1.msra.mxu0 %v229
    %272 = vmatprep.subr.mxu0 0.0
    %273 = vmatpush1.msra.mxu0 %v228
    %274 = vmatprep.subr.mxu0 0.0
    %275 = vmatpush1.msra.mxu0 %v227
    %276 = vmatprep.subr.mxu0 0.0
    %277 = vmatpush1.msra.mxu0 %v226
    %278 = vmatprep.subr.mxu0 0.0
    %279 = vmatpush1.msra.mxu0 %v225
    %280 = vmatprep.subr.mxu0 0.0
    %281 = vmatpush2.msra.mxu0 0.0
    %282 = vmatprep.subr.mxu0 0.0
    %283 = vmatpush2.msra.mxu0 0.0
    %284 = vmatprep.subr.mxu0 0.0
    %285 = vmatpush2.msra.mxu0 0.0
    %286 = vmatprep.subr.mxu0 0.0
    %287 = vmatpush2.msra.mxu0 0.0
    %288 = vmatprep.subr.mxu0 0.0
    %289 = vmatpush2.msra.mxu0 0.0
    %290 = vmatprep.subr.mxu0 0.0
    %291 = vmatpush2.msra.mxu0 0.0
    %292 = vmatprep.subr.mxu0 0.0
    %293 = vmatpush2.msra.mxu0 0.0
    %294 = vmatprep.subr.mxu0 0.0
    %295 = vmatpush2.msra.mxu0 0.0
    %296 = vmatprep.subr.mxu0 0.0
    %297 = vmatpush2.msra.mxu0 0.0
    %298 = vmatprep.subr.mxu0 0.0
    %299 = vmatpush2.msra.mxu0 0.0
    %300 = vmatprep.subr.mxu0 0.0
    %301 = vmatpush2.msra.mxu0 0.0
    %302 = vmatprep.subr.mxu0 0.0
    %303 = vmatpush2.msra.mxu0 0.0
    %304 = vmatprep.subr.mxu0 0.0
    %305 = vmatpush2.msra.mxu0 0.0
    %306 = vmatprep.subr.mxu0 0.0
    %307 = vmatpush2.msra.mxu0 0.0
    %308 = vmatprep.subr.mxu0 0.0
    %309 = vmatpush2.msra.mxu0 0.0
    %310 = vmatprep.subr.mxu0 0.0
    %311 = vmatpush2.msra.mxu0 0.0
    %312 = vmatprep.mubr.f32.mxu0 0.0
    %313 = vmatmul.mubr.f32.gmra.mxu0 %v224
    %v314 = vpop.f32.mrf.mxu0
    %v315 = vadd.f32 %v246, %v314
    %v316 = vpop.f32.mrf.mxu0
    %317 = vdwg.mxu0
    %v318 = vmax.f32 %v315, 0.0
    %v319 = vld [vmem:[%s7] sm:$0x1]
    %v321 = vlaneseq
    %v322 = vshrl.u32 %v321, 7
    %v323 = vsub.s32 0, %v322
    %v324 = vrot.slane %v319, %v323
    %v326 = vmul.f32 %v318, %v324
    %327 = vxpose.xlu0.b32.start [1/16] %v326, 128
    %328 = vxpose.xlu0.b32.cont [2/16] 0.0, 128
    %329 = vxpose.xlu0.b32.cont [3/16] 0.0, 128
    %330 = vxpose.xlu0.b32.cont [4/16] 0.0, 128
    %331 = vxpose.xlu0.b32.cont [5/16] 0.0, 128
    %332 = vxpose.xlu0.b32.cont [6/16] 0.0, 128
    %333 = vxpose.xlu0.b32.cont [7/16] 0.0, 128
    %334 = vxpose.xlu0.b32.cont [8/16] 0.0, 128
    %335 = vxpose.xlu0.b32.cont [9/16] 0.0, 128
    %336 = vxpose.xlu0.b32.cont [10/16] 0.0, 128
    %337 = vxpose.xlu0.b32.cont [11/16] 0.0, 128
    %338 = vxpose.xlu0.b32.cont [12/16] 0.0, 128
    %339 = vxpose.xlu0.b32.cont [13/16] 0.0, 128
    %340 = vxpose.xlu0.b32.cont [14/16] 0.0, 128
    %341 = vxpose.xlu0.b32.cont [15/16] 0.0, 128
    %342 = vxpose.xlu0.b32.end [16/16] 0.0, 128
    %v343 = vpop.trf.xlu0
    %v344 = vpop.trf.xlu0
    %v345 = vpop.trf.xlu0
    %v346 = vpop.trf.xlu0
    %v347 = vpop.trf.xlu0
    %v348 = vpop.trf.xlu0
    %v349 = vpop.trf.xlu0
    %v350 = vpop.trf.xlu0
    %v351 = vpop.trf.xlu0
    %v352 = vpop.trf.xlu0
    %v353 = vpop.trf.xlu0
    %v354 = vpop.trf.xlu0
    %v355 = vpop.trf.xlu0
    %v356 = vpop.trf.xlu0
    %v357 = vpop.trf.xlu0
    %v358 = vpop.trf.xlu0
    %v359 = vsel %vm142, %v343, 0.0
    %v360 = vsel %vm142, %v344, 0.0
    %v361 = vadd.f32 %v359, %v360
    %v362 = vsel %vm142, %v345, 0.0
    %v363 = vadd.f32 %v361, %v362
    %v364 = vsel %vm142, %v346, 0.0
    %v365 = vadd.f32 %v363, %v364
    %v366 = vsel %vm142, %v347, 0.0
    %v367 = vadd.f32 %v365, %v366
    %v368 = vsel %vm142, %v348, 0.0
    %v369 = vadd.f32 %v367, %v368
    %v370 = vsel %vm142, %v349, 0.0
    %v371 = vadd.f32 %v369, %v370
    %v372 = vsel %vm142, %v350, 0.0
    %v373 = vadd.f32 %v371, %v372
    %v374 = vsel %vm142, %v351, 0.0
    %v375 = vadd.f32 %v373, %v374
    %v376 = vsel %vm142, %v352, 0.0
    %v377 = vadd.f32 %v375, %v376
    %v378 = vsel %vm142, %v353, 0.0
    %v379 = vadd.f32 %v377, %v378
    %v380 = vsel %vm142, %v354, 0.0
    %v381 = vadd.f32 %v379, %v380
    %v382 = vsel %vm142, %v355, 0.0
    %v383 = vadd.f32 %v381, %v382
    %v384 = vsel %vm142, %v356, 0.0
    %v385 = vadd.f32 %v383, %v384
    %v386 = vsel %vm142, %v357, 0.0
    %v387 = vadd.f32 %v385, %v386
    %v388 = vsel %vm142, %v358, 0.0
    %v389 = vadd.f32 %v387, %v388
    %v390 = vrot.slane %v389, 4
    %v391 = vadd.f32 %v389, %v390
    %v392 = vrot.slane %v391, 2
    %v393 = vadd.f32 %v391, %v392
    %v394 = vrot.slane %v393, 1
    %v395 = vadd.f32 %v393, %v394
    %s396 = sld [smem:[#allocation2]]
    %v397 = vstv %s396
    %v398 = vadd.f32 %v395, %v397
    %vm399 = vcmask 57344
    %400 = vst.msk [vmem:[#allocation8] sm:$0x1] %vm399, %v398
    // Predicated region
    $region46: #{tpu_custom_call.1} parent=1 // pred_check
      _
    $region47: #{tpu_custom_call.1} parent=1 // pred_check_branch
      %402 = sbr.rel (0) target = $region49
    $region48: #{tpu_custom_call.1} parent=1 // pred_region
      %s404 = ssub.s32 16, 16
      %405 = vsyncadd [#allocation5], %s404
      %s407 = sshll.u32 [#allocation8], 4
      %s408 = int_to_ptr.vmem [resolvable:$true] %s407
      %410 = dma.vmem_to_hbm [thread:$0]  %s408, 16, %s9, [#allocation5]
    $region49: #{tpu_custom_call.1} parent=1 // pred_fallthru
      _
    // Predicated region
    $region50: #{tpu_custom_call.1} parent=1 // pred_check
      _
    $region51: #{tpu_custom_call.1} parent=1 // pred_check_branch
      %412 = sbr.rel (0) target = $region53
    $region52: #{tpu_custom_call.1} parent=1 // pred_region
      %413 = dma.done [#allocation5], 16
    $region53: #{tpu_custom_call.1} parent=1 // pred_fallthru
      _
    %414 = vsyncpa [#allocation4], 1
    %415 = vsyncpa [#allocation7], 1
    %416 = vsyncpa [#allocation5], 1

</llo_original>
